<compile_context>
chip_gen: v7x
topology: tpu7x:2x2x1
jax: 0.10.0
libtpu: 0.0.40
codegen_flags: <defaults>
</compile_context>

<pallas_src>
import functools

import jax
import jax.numpy as jnp
from jax.experimental import pallas as pl
from jax.experimental.pallas import tpu as pltpu


def _round_up(x, m):
    return ((x + m - 1) // m) * m


def _pick_tile(padded_n, target, *, min_blocks=1):
    """Largest multiple-of-128 divisor of padded_n that is <= target, leaving
    at least `min_blocks` blocks when possible. padded_n must be a multiple
    of 128."""
    cap = min(padded_n // max(min_blocks, 1), target)
    cap = max(128, (cap // 128) * 128)
    t = cap
    while padded_n % t != 0:
        t -= 128
    return t


# --------------------------------------------------------------------------
# Prologue: row-wise L2 normalization (+ optional bf16 cast), done once.
# --------------------------------------------------------------------------
def _normalize_kernel(x_ref, out_ref):
    x = x_ref[...].astype(jnp.float32)
    # clamp(sqrt(ss), 1e-8) == sqrt(max(ss, 1e-16)); rsqrt runs on the EUP.
    inv_n = jax.lax.rsqrt(jnp.maximum(jnp.sum(x * x, axis=1, keepdims=True),
                                      1e-16))
    out_ref[...] = (x * inv_n).astype(out_ref.dtype)


def _normalize_rows(x, out_dtype):
    bp, d = x.shape
    out_bytes = jnp.dtype(out_dtype).itemsize
    target = max(128, (16 * 1024 * 1024) // (2 * d * (4 + out_bytes)))
    tile = _pick_tile(bp, target)
    return pl.pallas_call(
        _normalize_kernel,
        out_shape=jax.ShapeDtypeStruct((bp, d), out_dtype),
        grid_spec=pltpu.PrefetchScalarGridSpec(
            num_scalar_prefetch=0,
            grid=(bp // tile,),
            in_specs=[pl.BlockSpec((tile, d), lambda i: (i, 0))],
            out_specs=pl.BlockSpec((tile, d), lambda i: (i, 0)),
        ),
        compiler_params=pltpu.CompilerParams(
            dimension_semantics=("parallel",),
            vmem_limit_bytes=32 * 1024 * 1024),
    )(x)


# --------------------------------------------------------------------------
# Main kernel: tiled similarity + online log-sum-exp + row-sum accumulation.
# --------------------------------------------------------------------------
def _supcon_kernel(z1n_ref, z2n_ref, pw_ref, out_ref,
                   m_sc, l_sc, rs_sc, *,
                   inv_temp, total_b, valid_b):
    j = pl.program_id(1)
    n_col = pl.num_programs(1)

    # Init accumulators at the first column block of each row block.
    @pl.when(j == 0)
    def _():
        # sim is clamped to >= -100, so -100 is an exact lower bound on the max.
        m_sc[...] = jnp.full(m_sc.shape, -100.0, jnp.float32)
        l_sc[...] = jnp.zeros(l_sc.shape, jnp.float32)
        rs_sc[...] = jnp.zeros(rs_sc.shape, jnp.float32)

    # Features arrive already normalized (and bf16 by default): MXU-native.
    sim = jax.lax.dot_general(
        z1n_ref[...], z2n_ref[...], (((1,), (1,)), ((), ())),
        preferred_element_type=jnp.float32) * inv_temp
    sim = jnp.clip(sim, -100.0, 100.0)                       # (TB, TN)

    # Mask out padded columns (global column index >= true batch size).
    tn = sim.shape[1]
    col_ids = j * tn + jax.lax.broadcasted_iota(jnp.int32, sim.shape, 1)
    valid = col_ids < valid_b

    # Online log-sum-exp + row-sum; no (B, B) array is ever materialized.
    blk_max = jnp.max(jnp.where(valid, sim, -100.0), axis=1, keepdims=True)
    m_new = jnp.maximum(m_sc[...], blk_max)
    alpha = jnp.exp(m_sc[...] - m_new)
    p = jnp.where(valid, jnp.exp(sim - m_new), 0.0)
    l_sc[...] = l_sc[...] * alpha + jnp.sum(p, axis=1, keepdims=True)
    rs_sc[...] = rs_sc[...] + jnp.sum(jnp.where(valid, sim, 0.0),
                                      axis=1, keepdims=True)
    m_sc[...] = m_new

    # Finalize this row block: reduce per-row numerators to one scalar and
    # write it into a small lane-dense (8, 128) partial tile.
    @pl.when(j == n_col - 1)
    def _():
        pw = pw_ref[...]                                     # (TB, 1), 0 for pad rows
        lse = m_sc[...] + jnp.log(l_sc[...])                 # exact LSE
        numer_rows = -pw * (rs_sc[...] - jnp.float32(total_b) * lse)
        blk_sum = jnp.sum(numer_rows)
        rids = jax.lax.broadcasted_iota(jnp.int32, out_ref.shape, 0)
        cids = jax.lax.broadcasted_iota(jnp.int32, out_ref.shape, 1)
        out_ref[...] = jnp.where((rids == 0) & (cids == 0), blk_sum,
                                 jnp.float32(0.0))


def supervised_contrastive_loss(z1, z2, labels, *,
                                temperature=0.1,
                                pos_weight=0.985,
                                neg_weight=0.015,
                                row_tile=512,
                                col_tile=512,
                                use_bf16_matmul=True):
    B, D = z1.shape
    Bp = _round_up(B, 128)

    # Per-row weight from labels: tiny O(B*C) work, done outside the kernel.
    li = jnp.argmax(labels, axis=1)
    pw = jnp.where(li == 1, jnp.float32(neg_weight), jnp.float32(pos_weight))
    pw_sum = jnp.sum(pw)
    pw_p = jnp.pad(pw.reshape(B, 1).astype(jnp.float32),
                   ((0, Bp - B), (0, 0)))                    # 0 for padded rows

    # Normalize once (prologue kernel), pad rows to a multiple of 128, cast
    # to bf16 for the MXU / to halve the repeatedly streamed HBM bytes.
    feat_dtype = jnp.bfloat16 if use_bf16_matmul else jnp.float32
    z1p = jnp.pad(z1.astype(jnp.float32), ((0, Bp - B), (0, 0)))
    z2p = jnp.pad(z2.astype(jnp.float32), ((0, Bp - B), (0, 0)))
    z1n = _normalize_rows(z1p, feat_dtype)
    z2n = _normalize_rows(z2p, feat_dtype)

    # Tile selection: multiples of 128, >= 2 row blocks when possible (v7x
    # megacore), shrunk to fit a VMEM budget safe on v7x's 64 MiB.
    min_row_blocks = 2 if Bp >= 256 else 1
    tb = _pick_tile(Bp, row_tile, min_blocks=min_row_blocks)
    tn = _pick_tile(Bp, col_tile)

    feat_bytes = 2 if use_bf16_matmul else 4

    def _est(tb_, tn_):
        return (2 * (tb_ + tn_) * D * feat_bytes   # double-buffered features
                + 2 * tb_ * 4                      # double-buffered weights
                + 3 * tb_ * tn_ * 4                # sim tile + temporaries
                + 3 * tb_ * 4 + 2 * 8 * 128 * 4)   # scratch + output

    budget = 40 * 1024 * 1024
    while _est(tb, tn) > budget and (tb > 128 or tn > 128):
        if tb >= tn and tb > 128:
            tb = _pick_tile(Bp, tb // 2, min_blocks=min_row_blocks)
        else:
            tn = _pick_tile(Bp, tn // 2)
    vmem_limit = int(min(64 * 1024 * 1024,
                         max(32 * 1024 * 1024, 2 * _est(tb, tn))))

    n_row = Bp // tb
    n_col = Bp // tn

    kernel = functools.partial(
        _supcon_kernel,
        inv_temp=float(1.0 / temperature),
        total_b=B,
        valid_b=B)

    partials = pl.pallas_call(
        kernel,
        out_shape=jax.ShapeDtypeStruct((n_row * 8, 128), jnp.float32),
        grid_spec=pltpu.PrefetchScalarGridSpec(
            num_scalar_prefetch=0,
            grid=(n_row, n_col),
            in_specs=[
                pl.BlockSpec((tb, D), lambda i, j: (i, 0)),   # z1n row block
                pl.BlockSpec((tn, D), lambda i, j: (j, 0)),   # z2n col block
                pl.BlockSpec((tb, 1), lambda i, j: (i, 0)),   # per-row weight
            ],
            out_specs=pl.BlockSpec((8, 128), lambda i, j: (i, 0)),
            scratch_shapes=[pltpu.VMEM((tb, 1), jnp.float32),   # running max
                            pltpu.VMEM((tb, 1), jnp.float32),   # running sum-exp
                            pltpu.VMEM((tb, 1), jnp.float32)],  # rowsum(sim)
        ),
        compiler_params=pltpu.CompilerParams(
            dimension_semantics=("parallel", "arbitrary"),
            vmem_limit_bytes=vmem_limit),
    )(z1n, z2n, pw_p)

    numer = jnp.sum(partials)
    denom = jnp.float32(B) * pw_sum + 1e-8
    return numer / denom


def _reference_loss(z1, z2, labels, temperature=0.1,
                    pos_weight=0.985, neg_weight=0.015):
    # Plain-JAX reference mirroring the PyTorch module, for validation.
    n1 = jnp.maximum(jnp.linalg.norm(z1, axis=1, keepdims=True), 1e-8)
    n2 = jnp.maximum(jnp.linalg.norm(z2, axis=1, keepdims=True), 1e-8)
    z1 = z1 / n1
    z2 = z2 / n2
    li = jnp.argmax(labels, axis=1)
    sim = jnp.clip(
        jnp.matmul(z1, z2.T, precision=jax.lax.Precision.HIGHEST) / temperature,
        -100.0, 100.0)
    pos_mask = (li[None, :] == li[:, None]).astype(jnp.float32)
    neg_mask = 1.0 - pos_mask
    pw = jnp.where(li == 1, neg_weight, pos_weight)
    wp = pos_mask * pw[:, None]
    wn = neg_mask * pw[:, None]
    log_prob = sim - jnp.log(jnp.sum(jnp.exp(sim), axis=1, keepdims=True))
    num = jnp.sum(-wp * log_prob) + jnp.sum(-wn * log_prob)
    den = jnp.sum(wp) + jnp.sum(wn) + 1e-8
    return num / den


if __name__ == "__main__":
    key = jax.random.PRNGKey(0)
    k1, k2, k3 = jax.random.split(key, 3)

    # Small shapes consistent with the module's forward (B, D features; B, C labels).
    B, D, C = 8, 32, 4
    z1 = jax.random.normal(k1, (B, D), dtype=jnp.float32)
    z2 = jax.random.normal(k2, (B, D), dtype=jnp.float32)
    classes = jax.random.randint(k3, (B,), 0, C)
    labels = jax.nn.one_hot(classes, C, dtype=jnp.float32)
    ref = _reference_loss(z1, z2, labels)

    # 1) f32 matmul path: tight tolerance vs the f32 reference.
    loss_f32 = jax.block_until_ready(
        supervised_contrastive_loss(z1, z2, labels, use_bf16_matmul=False))
    assert jnp.allclose(loss_f32, ref, rtol=5e-3, atol=5e-3), (loss_f32, ref)

    # 2) Default (bf16 MXU) path: scalar loss, loose tolerance.
    loss_bf16 = jax.block_until_ready(
        supervised_contrastive_loss(z1, z2, labels))
    assert jnp.allclose(loss_bf16, ref, rtol=5e-2, atol=5e-2), (loss_bf16, ref)

    # 3) Multi-block path with padding (B not a multiple of 128) and several
    #    row/column blocks, exercising the online-LSE + column masking.
    B2, D2, C2 = 200, 96, 4
    kk1, kk2, kk3 = jax.random.split(jax.random.PRNGKey(1), 3)
    z1b = jax.random.normal(kk1, (B2, D2), dtype=jnp.float32)
    z2b = jax.random.normal(kk2, (B2, D2), dtype=jnp.float32)
    labels_b = jax.nn.one_hot(jax.random.randint(kk3, (B2,), 0, C2), C2,
                              dtype=jnp.float32)
    ref_b = _reference_loss(z1b, z2b, labels_b)
    loss_b = jax.block_until_ready(
        supervised_contrastive_loss(z1b, z2b, labels_b,
                                    row_tile=128, col_tile=128))
    assert jnp.allclose(loss_b, ref_b, rtol=5e-2, atol=5e-2), (loss_b, ref_b)

    print("KERNEL_OK")
</pallas_src>

<mosaic_0001>
module attributes {stable_mosaic.version = 11 : i64} {
  func.func @_normalize_kernel(%arg0: i32, %arg1: memref<128x32xf32, #tpu.memory_space<vmem>>, %arg2: memref<128x32xf32, #tpu.memory_space<vmem>>) attributes {dimension_semantics = [#tpu.dimension_semantics<parallel>], iteration_bounds = array<i64: 1>, scalar_prefetch = 0 : i64, scratch_operands = 0 : i64, tpu.core_type = #tpu.core_type<tc>, window_params = [{transform_indices = @transform_0, window_bounds = array<i64: 128, 32>}, {transform_indices = @transform_1, window_bounds = array<i64: 128, 32>}]} {
    %c0 = arith.constant 0 : index
    %c0_0 = arith.constant 0 : index
    %0 = vector.load %arg1[%c0, %c0_0] : memref<128x32xf32, #tpu.memory_space<vmem>>, vector<128x32xf32>
    %1 = arith.mulf %0, %0 : vector<128x32xf32>
    %cst = arith.constant dense<0.000000e+00> : vector<128xf32>
    %2 = vector.multi_reduction <add>, %1, %cst [1] : vector<128x32xf32> to vector<128xf32>
    %3 = vector.shape_cast %2 : vector<128xf32> to vector<128x1xf32>
    %cst_1 = arith.constant 1.000000e-16 : f32
    %4 = vector.broadcast %cst_1 : f32 to vector<128x1xf32>
    %5 = arith.maximumf %3, %4 : vector<128x1xf32>
    %6 = math.rsqrt %5 : vector<128x1xf32>
    %7 = vector.broadcast %6 : vector<128x1xf32> to vector<128x32xf32>
    %8 = arith.mulf %0, %7 : vector<128x32xf32>
    %c0_2 = arith.constant 0 : index
    %c0_3 = arith.constant 0 : index
    %9 = vector.load %arg2[%c0_2, %c0_3] : memref<128x32xf32, #tpu.memory_space<vmem>>, vector<128x32xf32>
    tpu.vector_store %arg2[%c0_2, %c0_3], %8 {strides = array<i32>} : memref<128x32xf32, #tpu.memory_space<vmem>>, vector<128x32xf32>,
    return
  }
  func.func @transform_0(%arg0: i32) -> (i32, i32) {
    %c0_i32 = arith.constant 0 : i32
    %c0_i32_0 = arith.constant 0 : i32
    return %arg0, %c0_i32 : i32, i32
  }
  func.func @transform_1(%arg0: i32) -> (i32, i32) {
    %c0_i32 = arith.constant 0 : i32
    %c0_i32_0 = arith.constant 0 : i32
    return %arg0, %c0_i32 : i32, i32
  }
}

</mosaic_0001>

<llo_original>
// kernel: tpu_custom_call.1
$region0: #{tpu_custom_call.1}
  #allocation0 [shape = 'u32[]', space=smem, size = 0x4, offset = 0x4, fixed_abs, tag = 'smem constant byte address 0x4 - core index']
  #allocation1 [shape = 'u32[144,128]{1,0:T(1,128)}', space=vmem, size = 0x12000, scoped, tag = 'internal scratch']
  %s0 = inlined_call_operand.vmem [shape: f32[128,32], index: 0, kind: input, shape index: {}]
  %s1 = inlined_call_operand.vmem [shape: f32[128,32], index: 1, kind: output, shape index: {}]
  %s2 = sld [smem:[#allocation0]]
  $region14: #{tpu_custom_call.1} parent=0
    _
  %s4 = ssub.s32 1, %s2
  %s5 = scalar_select 0, %s4, %s2
  // Predicated region
  $region2: #{tpu_custom_call.1} parent=0 // pred_check
    _
  $region3: #{tpu_custom_call.1} parent=0 // pred_check_branch
    %7 = sbr.rel (0) target = $region5
  $region4: #{tpu_custom_call.1} parent=0 // pred_region
    _
  $region5: #{tpu_custom_call.1} parent=0 // pred_fallthru
    _
  %v8 = vld [vmem:[%s0] sm:$0xff]
  %v9 = vld [vmem:[%s0 + $0x8] sm:$0xff]
  %v10 = vld [vmem:[%s0 + $0x10] sm:$0xff]
  %v11 = vld [vmem:[%s0 + $0x18] sm:$0xff]
  %v12 = vld [vmem:[%s0 + $0x20] sm:$0xff]
  %v13 = vld [vmem:[%s0 + $0x28] sm:$0xff]
  %v14 = vld [vmem:[%s0 + $0x30] sm:$0xff]
  %v15 = vld [vmem:[%s0 + $0x38] sm:$0xff]
  %v16 = vld [vmem:[%s0 + $0x40] sm:$0xff]
  %v17 = vld [vmem:[%s0 + $0x48] sm:$0xff]
  %v18 = vld [vmem:[%s0 + $0x50] sm:$0xff]
  %v19 = vld [vmem:[%s0 + $0x58] sm:$0xff]
  %v20 = vld [vmem:[%s0 + $0x60] sm:$0xff]
  %v21 = vld [vmem:[%s0 + $0x68] sm:$0xff]
  %v22 = vld [vmem:[%s0 + $0x70] sm:$0xff]
  %v23 = vld [vmem:[%s0 + $0x78] sm:$0xff]
  %v24 = vmul.f32 %v8, %v8
  %v25 = vmul.f32 %v9, %v9
  %v26 = vmul.f32 %v10, %v10
  %v27 = vmul.f32 %v11, %v11
  %v28 = vmul.f32 %v12, %v12
  %v29 = vmul.f32 %v13, %v13
  %v30 = vmul.f32 %v14, %v14
  %v31 = vmul.f32 %v15, %v15
  %v32 = vmul.f32 %v16, %v16
  %v33 = vmul.f32 %v17, %v17
  %v34 = vmul.f32 %v18, %v18
  %v35 = vmul.f32 %v19, %v19
  %v36 = vmul.f32 %v20, %v20
  %v37 = vmul.f32 %v21, %v21
  %v38 = vmul.f32 %v22, %v22
  %v39 = vmul.f32 %v23, %v23
  %vm40 = vcmask 261120
  %v41 = vsel %vm40, %v24, 0.0
  %42 = vadd.xlane.f32.xlu0 %v41
  %v43 = vpop.xlane.xlu0 %42
  %v44 = vsel %vm40, %v25, 0.0
  %45 = vadd.xlane.f32.xlu0 %v44
  %v46 = vpop.xlane.xlu0 %45
  %v47 = vsel %vm40, %v26, 0.0
  %48 = vadd.xlane.f32.xlu0 %v47
  %v49 = vpop.xlane.xlu0 %48
  %v50 = vsel %vm40, %v27, 0.0
  %51 = vadd.xlane.f32.xlu0 %v50
  %v52 = vpop.xlane.xlu0 %51
  %v53 = vsel %vm40, %v28, 0.0
  %54 = vadd.xlane.f32.xlu0 %v53
  %v55 = vpop.xlane.xlu0 %54
  %v56 = vsel %vm40, %v29, 0.0
  %57 = vadd.xlane.f32.xlu0 %v56
  %v58 = vpop.xlane.xlu0 %57
  %v59 = vsel %vm40, %v30, 0.0
  %60 = vadd.xlane.f32.xlu0 %v59
  %v61 = vpop.xlane.xlu0 %60
  %v62 = vsel %vm40, %v31, 0.0
  %63 = vadd.xlane.f32.xlu0 %v62
  %v64 = vpop.xlane.xlu0 %63
  %v65 = vsel %vm40, %v32, 0.0
  %66 = vadd.xlane.f32.xlu0 %v65
  %v67 = vpop.xlane.xlu0 %66
  %v68 = vsel %vm40, %v33, 0.0
  %69 = vadd.xlane.f32.xlu0 %v68
  %v70 = vpop.xlane.xlu0 %69
  %v71 = vsel %vm40, %v34, 0.0
  %72 = vadd.xlane.f32.xlu0 %v71
  %v73 = vpop.xlane.xlu0 %72
  %v74 = vsel %vm40, %v35, 0.0
  %75 = vadd.xlane.f32.xlu0 %v74
  %v76 = vpop.xlane.xlu0 %75
  %v77 = vsel %vm40, %v36, 0.0
  %78 = vadd.xlane.f32.xlu0 %v77
  %v79 = vpop.xlane.xlu0 %78
  %v80 = vsel %vm40, %v37, 0.0
  %81 = vadd.xlane.f32.xlu0 %v80
  %v82 = vpop.xlane.xlu0 %81
  %v83 = vsel %vm40, %v38, 0.0
  %84 = vadd.xlane.f32.xlu0 %v83
  %v85 = vpop.xlane.xlu0 %84
  %v86 = vsel %vm40, %v39, 0.0
  %87 = vadd.xlane.f32.xlu0 %v86
  %v88 = vpop.xlane.xlu0 %87
  %v89 = vmax.f32 %v43, 1e-16
  %v90 = vmax.f32 %v46, 1e-16
  %v91 = vmax.f32 %v49, 1e-16
  %v92 = vmax.f32 %v52, 1e-16
  %v93 = vmax.f32 %v55, 1e-16
  %v94 = vmax.f32 %v58, 1e-16
  %v95 = vmax.f32 %v61, 1e-16
  %v96 = vmax.f32 %v64, 1e-16
  %v97 = vmax.f32 %v67, 1e-16
  %v98 = vmax.f32 %v70, 1e-16
  %v99 = vmax.f32 %v73, 1e-16
  %v100 = vmax.f32 %v76, 1e-16
  %v101 = vmax.f32 %v79, 1e-16
  %v102 = vmax.f32 %v82, 1e-16
  %v103 = vmax.f32 %v85, 1e-16
  %v104 = vmax.f32 %v88, 1e-16
  %v105 = vrsqrt.pop %v89
  %v106 = vrsqrt.pop %v90
  %v107 = vrsqrt.pop %v91
  %v108 = vrsqrt.pop %v92
  %v109 = vrsqrt.pop %v93
  %v110 = vrsqrt.pop %v94
  %v111 = vrsqrt.pop %v95
  %v112 = vrsqrt.pop %v96
  %v113 = vrsqrt.pop %v97
  %v114 = vrsqrt.pop %v98
  %v115 = vrsqrt.pop %v99
  %v116 = vrsqrt.pop %v100
  %v117 = vrsqrt.pop %v101
  %v118 = vrsqrt.pop %v102
  %v119 = vrsqrt.pop %v103
  %v120 = vrsqrt.pop %v104
  %v121 = vmul.f32 %v8, %v105
  %v122 = vmul.f32 %v9, %v106
  %v123 = vmul.f32 %v10, %v107
  %v124 = vmul.f32 %v11, %v108
  %v125 = vmul.f32 %v12, %v109
  %v126 = vmul.f32 %v13, %v110
  %v127 = vmul.f32 %v14, %v111
  %v128 = vmul.f32 %v15, %v112
  %v129 = vmul.f32 %v16, %v113
  %v130 = vmul.f32 %v17, %v114
  %v131 = vmul.f32 %v18, %v115
  %v132 = vmul.f32 %v19, %v116
  %v133 = vmul.f32 %v20, %v117
  %v134 = vmul.f32 %v21, %v118
  %v135 = vmul.f32 %v22, %v119
  %v136 = vmul.f32 %v23, %v120
  %137 = vst.msk [vmem:[%s1] sm:$0xff] %vm40, %v121
  %138 = vst.msk [vmem:[%s1 + $0x8] sm:$0xff] %vm40, %v122
  %139 = vst.msk [vmem:[%s1 + $0x10] sm:$0xff] %vm40, %v123
  %140 = vst.msk [vmem:[%s1 + $0x18] sm:$0xff] %vm40, %v124
  %141 = vst.msk [vmem:[%s1 + $0x20] sm:$0xff] %vm40, %v125
  %142 = vst.msk [vmem:[%s1 + $0x28] sm:$0xff] %vm40, %v126
  %143 = vst.msk [vmem:[%s1 + $0x30] sm:$0xff] %vm40, %v127
  %144 = vst.msk [vmem:[%s1 + $0x38] sm:$0xff] %vm40, %v128
  %145 = vst.msk [vmem:[%s1 + $0x40] sm:$0xff] %vm40, %v129
  %146 = vst.msk [vmem:[%s1 + $0x48] sm:$0xff] %vm40, %v130
  %147 = vst.msk [vmem:[%s1 + $0x50] sm:$0xff] %vm40, %v131
  %148 = vst.msk [vmem:[%s1 + $0x58] sm:$0xff] %vm40, %v132
  %149 = vst.msk [vmem:[%s1 + $0x60] sm:$0xff] %vm40, %v133
  %150 = vst.msk [vmem:[%s1 + $0x68] sm:$0xff] %vm40, %v134
  %151 = vst.msk [vmem:[%s1 + $0x70] sm:$0xff] %vm40, %v135
  %152 = vst.msk [vmem:[%s1 + $0x78] sm:$0xff] %vm40, %v136
  // Predicated region
  $region6: #{tpu_custom_call.1} parent=0 // pred_check
    _
  $region7: #{tpu_custom_call.1} parent=0 // pred_check_branch
    %154 = sbr.rel (0) target = $region9
  $region8: #{tpu_custom_call.1} parent=0 // pred_region
    _
  $region9: #{tpu_custom_call.1} parent=0 // pred_fallthru
    _
  // Predicated region
  $region10: #{tpu_custom_call.1} parent=0 // pred_check
    _
  $region11: #{tpu_custom_call.1} parent=0 // pred_check_branch
    %156 = sbr.rel (0) target = $region13
  $region12: #{tpu_custom_call.1} parent=0 // pred_region
    _
  $region13: #{tpu_custom_call.1} parent=0 // pred_fallthru
    _

</llo_original>
